<compile_context>
chip_gen: v7x
topology: tpu7x:2x2x1
jax: 0.10.0
libtpu: 0.0.40
codegen_flags: <defaults>
</compile_context>

<pallas_src>
import jax
import jax.numpy as jnp
from jax import lax
from jax.experimental import pallas as pl
from jax.experimental.pallas import tpu as pltpu

BN_EPS = 1e-5


def residual_block_kernel(x_mm_ref, w_ref, x_id_ref, gb_ref, o_ref):
    # x_mm: (B, tk)  bf16 — matmul LHS tile (constant block when tk == F)
    # w:    (tn, tk) bf16 — PyTorch (out, in) layout tile
    # x_id: (B, tn)  f32  — residual identity tile (constant in k -> resident)
    # gb:   (2, tn)  f32  — row 0 = gamma, row 1 = beta
    # o:    (B, tn)  f32  — output tile, doubles as the MXU accumulator
    k = pl.program_id(1)

    # (B, tk) x (tn, tk) contracted on the in-feature axis -> (B, tn).
    # MXU handles the transposed RHS natively; f32 accumulation.
    partial = lax.dot_general(
        x_mm_ref[...], w_ref[...],
        dimension_numbers=(((1,), (1,)), ((), ())),
        preferred_element_type=jnp.float32)

    @pl.when(k == 0)
    def _():
        o_ref[...] = partial

    @pl.when(k != 0)
    def _():
        o_ref[...] += partial

    @pl.when(k == pl.num_programs(1) - 1)
    def _():
        # Epilogue in f32: BatchNorm1d (training-mode batch stats), ReLU,
        # residual add.  The Linear bias is omitted on purpose: it is cancelled
        # exactly by the mean subtraction below.
        y = o_ref[...]                                   # (B, tn) f32
        mean = jnp.mean(y, axis=0, keepdims=True)        # (1, tn)
        c = y - mean                                     # centered, reused
        var = jnp.mean(c * c, axis=0, keepdims=True)     # biased variance
        scale = gb_ref[0:1, :] * lax.rsqrt(var + BN_EPS)
        o_ref[...] = (jnp.maximum(c * scale + gb_ref[1:2, :], 0.0)
                      + x_id_ref[...]).astype(o_ref.dtype)


def _vmem_budget_bytes():
    """~75% of physical VMEM, generation-aware (v7x: 64 MiB, v5e/v6e: 128 MiB)."""
    try:
        cap = pltpu.get_tpu_info().vmem_capacity_bytes
    except Exception:
        cap = 64 * 1024 * 1024  # conservative (v7x) fallback
    return int(cap * 0.75)


def _divisor_tiles(F):
    cands = [t for t in (4096, 2048, 1024, 512, 256, 128) if F % t == 0]
    return cands or [F]


def _vmem_estimate(B, F, tn, tk):
    """Rough double-buffered working-set estimate for tile choice."""
    x_mm = 2 * B * tk * 2          # bf16 LHS tile
    w_t = 2 * tn * tk * 2          # bf16 weight tile
    x_id = 2 * B * tn * 4          # f32 identity tile
    out_t = 2 * B * tn * 4         # f32 output tile (accumulator)
    gb = 2 * 8 * tn * 4            # gamma/beta, padded to 8 sublanes
    return x_mm + w_t + x_id + out_t + gb + (2 << 20)   # + internal headroom


def _select_tiles(B, F, budget):
    tn_all = _divisor_tiles(F)
    # Keep >= 2 N tiles whenever F allows so both v7x TensorCores get work.
    tn_pref = [t for t in tn_all if F // t >= 2] or tn_all
    # Prefer collapsing the K axis (tk == F) so x is DMA'd exactly once.
    tk_pref = [F] + [t for t in _divisor_tiles(F) if t != F]
    for tn in tn_pref:
        for tk in tk_pref:
            if _vmem_estimate(B, F, tn, tk) <= budget:
                return tn, tk
    # TODO(synk): for batches so large that even the smallest tiles overflow
    # VMEM, a B-tiled two-pass BatchNorm would be needed; not implemented here.
    return tn_all[-1], _divisor_tiles(F)[-1]


def residual_block(x, w, gamma, beta, bias=None, *, tn=None, tk=None,
                   matmul_dtype=jnp.bfloat16):
    """x: (B, F); w: (F, F) PyTorch-style (out, in); gamma/beta: (F,).

    `bias` is accepted for API parity with nn.Linear but never read: a bias
    applied immediately before training-mode BatchNorm cancels in the mean
    subtraction and cannot affect the output (dead work, per perf review)."""
    del bias
    B, F = x.shape
    assert w.shape == (F, F)

    budget = _vmem_budget_bytes()
    if tn is None or tk is None:
        tn, tk = _select_tiles(B, F, budget)
    assert F % tn == 0 and F % tk == 0, (F, tn, tk)

    # bf16 matmul operands (no transpose copy of w), f32 everywhere else.
    x_mm = x.astype(matmul_dtype)
    w_mm = w.astype(matmul_dtype)
    x_id = x.astype(jnp.float32)
    gb = jnp.stack([gamma.astype(jnp.float32),
                    beta.astype(jnp.float32)], axis=0)        # (2, F)

    grid = (F // tn, F // tk)   # (N parallel, K reduction/arbitrary — last)

    return pl.pallas_call(
        residual_block_kernel,
        out_shape=jax.ShapeDtypeStruct((B, F), jnp.float32),
        grid_spec=pltpu.PrefetchScalarGridSpec(
            num_scalar_prefetch=0,
            grid=grid,
            in_specs=[
                pl.BlockSpec((B, tk), lambda n, k: (0, k)),   # x (matmul LHS)
                pl.BlockSpec((tn, tk), lambda n, k: (n, k)),  # w (out,in) tile
                pl.BlockSpec((B, tn), lambda n, k: (0, n)),   # identity (const in k)
                pl.BlockSpec((2, tn), lambda n, k: (0, n)),   # gamma/beta stacked
            ],
            out_specs=pl.BlockSpec((B, tn), lambda n, k: (0, n)),
        ),
        compiler_params=pltpu.CompilerParams(
            dimension_semantics=("parallel", "arbitrary"),
            vmem_limit_bytes=budget,
        ),
    )(x_mm, w_mm, x_id, gb)


def reference(x, w, b, gamma, beta, matmul_dtype=jnp.bfloat16):
    # Full PyTorch semantics incl. the Linear bias (which the kernel omits
    # because training-mode BN cancels it); same bf16 matmul / f32 epilogue.
    y = jnp.dot(x.astype(matmul_dtype), w.astype(matmul_dtype).T,
                preferred_element_type=jnp.float32) + b
    mean = jnp.mean(y, axis=0, keepdims=True)
    var = jnp.mean((y - mean) ** 2, axis=0, keepdims=True)
    y = (y - mean) / jnp.sqrt(var + BN_EPS) * gamma + beta
    return jnp.maximum(y, 0.0) + x


if __name__ == "__main__":
    B, F = 8, 256          # small but lane-dense; auto-tiling -> tn=128, tk=256

    key = jax.random.PRNGKey(0)
    kx, kw, kb, kg, kbe = jax.random.split(key, 5)

    x = jax.random.normal(kx, (B, F), dtype=jnp.float32)

    # nn.Linear default init: U(-1/sqrt(F), 1/sqrt(F)) for weight and bias.
    bound = 1.0 / jnp.sqrt(jnp.float32(F))
    w = jax.random.uniform(kw, (F, F), jnp.float32, -bound, bound)
    b = jax.random.uniform(kb, (F,), jnp.float32, -bound, bound)

    # Non-trivial BatchNorm affine params to exercise the epilogue.
    gamma = jax.random.uniform(kg, (F,), jnp.float32, 0.5, 1.5)
    beta = 0.1 * jax.random.normal(kbe, (F,), dtype=jnp.float32)

    out = residual_block(x, w, gamma, beta, bias=b)
    out = jax.block_until_ready(out)

    ref = reference(x, w, b, gamma, beta)
    assert out.shape == (B, F)
    assert jnp.allclose(out, ref, atol=2e-3, rtol=2e-3), "mismatch vs reference"

    print("KERNEL_OK")
</pallas_src>

<mosaic_0001>
module attributes {stable_mosaic.version = 11 : i64} {
  func.func @residual_block_kernel(%arg0: i32, %arg1: i32, %arg2: memref<8x256xbf16, #tpu.memory_space<vmem>>, %arg3: memref<128x256xbf16, #tpu.memory_space<vmem>>, %arg4: memref<8x128xf32, #tpu.memory_space<vmem>>, %arg5: memref<2x128xf32, #tpu.memory_space<vmem>>, %arg6: memref<8x128xf32, #tpu.memory_space<vmem>>) attributes {dimension_semantics = [#tpu.dimension_semantics<parallel>, #tpu.dimension_semantics<arbitrary>], iteration_bounds = array<i64: 2, 1>, scalar_prefetch = 0 : i64, scratch_operands = 0 : i64, tpu.core_type = #tpu.core_type<tc>, window_params = [{transform_indices = @transform_0, window_bounds = array<i64: 8, 256>}, {transform_indices = @transform_1, window_bounds = array<i64: 128, 256>}, {transform_indices = @transform_2, window_bounds = array<i64: 8, 128>}, {transform_indices = @transform_3, window_bounds = array<i64: 2, 128>}, {transform_indices = @transform_4, window_bounds = array<i64: 8, 128>}]} {
    %c0 = arith.constant 0 : index
    %c0_0 = arith.constant 0 : index
    %0 = vector.load %arg2[%c0, %c0_0] : memref<8x256xbf16, #tpu.memory_space<vmem>>, vector<8x256xbf16>
    %c0_1 = arith.constant 0 : index
    %c0_2 = arith.constant 0 : index
    %1 = vector.load %arg3[%c0_1, %c0_2] : memref<128x256xbf16, #tpu.memory_space<vmem>>, vector<128x256xbf16>
    %cst = arith.constant dense<0.000000e+00> : vector<8x128xf32>
    %2 = tpu.matmul %0, %1, %cst {dimension_numbers = #tpu.dot_dimension_numbers<[1], [1], [0], [0], [0, 0, 1, 0], [], []>} : vector<8x256xbf16>, vector<128x256xbf16>, vector<8x128xf32> -> vector<8x128xf32>
    %c0_i32 = arith.constant 0 : i32
    %3 = arith.cmpi eq, %arg1, %c0_i32 : i32
    %4 = arith.extui %3 : i1 to i32
    %c0_i32_3 = arith.constant 0 : i32
    %5 = arith.cmpi ne, %4, %c0_i32_3 : i32
    scf.if %5 {
      %c0_8 = arith.constant 0 : index
      %c0_9 = arith.constant 0 : index
      %12 = vector.load %arg6[%c0_8, %c0_9] : memref<8x128xf32, #tpu.memory_space<vmem>>, vector<8x128xf32>
      tpu.vector_store %arg6[%c0_8, %c0_9], %2 {strides = array<i32>} : memref<8x128xf32, #tpu.memory_space<vmem>>, vector<8x128xf32>,
    } else {
    }
    %c0_i32_4 = arith.constant 0 : i32
    %6 = arith.cmpi ne, %arg1, %c0_i32_4 : i32
    %7 = arith.extui %6 : i1 to i32
    %c0_i32_5 = arith.constant 0 : i32
    %8 = arith.cmpi ne, %7, %c0_i32_5 : i32
    scf.if %8 {
      %c0_8 = arith.constant 0 : index
      %c0_9 = arith.constant 0 : index
      %12 = vector.load %arg6[%c0_8, %c0_9] : memref<8x128xf32, #tpu.memory_space<vmem>>, vector<8x128xf32>
      %13 = arith.addf %12, %2 : vector<8x128xf32>
      %c0_10 = arith.constant 0 : index
      %c0_11 = arith.constant 0 : index
      %14 = vector.load %arg6[%c0_10, %c0_11] : memref<8x128xf32, #tpu.memory_space<vmem>>, vector<8x128xf32>
      tpu.vector_store %arg6[%c0_10, %c0_11], %13 {strides = array<i32>} : memref<8x128xf32, #tpu.memory_space<vmem>>, vector<8x128xf32>,
    } else {
    }
    %c0_i32_6 = arith.constant 0 : i32
    %9 = arith.cmpi eq, %arg1, %c0_i32_6 : i32
    %10 = arith.extui %9 : i1 to i32
    %c0_i32_7 = arith.constant 0 : i32
    %11 = arith.cmpi ne, %10, %c0_i32_7 : i32
    scf.if %11 {
      %c0_8 = arith.constant 0 : index
      %c0_9 = arith.constant 0 : index
      %12 = vector.load %arg6[%c0_8, %c0_9] : memref<8x128xf32, #tpu.memory_space<vmem>>, vector<8x128xf32>
      %cst_10 = arith.constant dense<0.000000e+00> : vector<128xf32>
      %13 = vector.multi_reduction <add>, %12, %cst_10 [0] : vector<8x128xf32> to vector<128xf32>
      %14 = vector.shape_cast %13 : vector<128xf32> to vector<1x128xf32>
      %cst_11 = arith.constant 8.000000e+00 : f32
      %15 = vector.broadcast %cst_11 : f32 to vector<1x128xf32>
      %16 = arith.divf %14, %15 : vector<1x128xf32>
      %17 = vector.broadcast %16 : vector<1x128xf32> to vector<8x128xf32>
      %18 = arith.subf %12, %17 : vector<8x128xf32>
      %19 = arith.mulf %18, %18 : vector<8x128xf32>
      %cst_12 = arith.constant dense<0.000000e+00> : vector<128xf32>
      %20 = vector.multi_reduction <add>, %19, %cst_12 [0] : vector<8x128xf32> to vector<128xf32>
      %21 = vector.shape_cast %20 : vector<128xf32> to vector<1x128xf32>
      %cst_13 = arith.constant 8.000000e+00 : f32
      %22 = vector.broadcast %cst_13 : f32 to vector<1x128xf32>
      %23 = arith.divf %21, %22 : vector<1x128xf32>
      %c0_14 = arith.constant 0 : index
      %c0_15 = arith.constant 0 : index
      %24 = vector.load %arg5[%c0_14, %c0_15] : memref<2x128xf32, #tpu.memory_space<vmem>>, vector<1x128xf32>
      %cst_16 = arith.constant 9.99999974E-6 : f32
      %25 = vector.broadcast %cst_16 : f32 to vector<1x128xf32>
      %26 = arith.addf %23, %25 : vector<1x128xf32>
      %27 = math.rsqrt %26 : vector<1x128xf32>
      %28 = arith.mulf %24, %27 : vector<1x128xf32>
      %29 = vector.broadcast %28 : vector<1x128xf32> to vector<8x128xf32>
      %30 = arith.mulf %18, %29 : vector<8x128xf32>
      %c1 = arith.constant 1 : index
      %c0_17 = arith.constant 0 : index
      %31 = vector.load %arg5[%c1, %c0_17] : memref<2x128xf32, #tpu.memory_space<vmem>>, vector<1x128xf32>
      %32 = vector.broadcast %31 : vector<1x128xf32> to vector<8x128xf32>
      %33 = arith.addf %30, %32 : vector<8x128xf32>
      %cst_18 = arith.constant 0.000000e+00 : f32
      %34 = vector.broadcast %cst_18 : f32 to vector<8x128xf32>
      %35 = arith.maximumf %33, %34 : vector<8x128xf32>
      %c0_19 = arith.constant 0 : index
      %c0_20 = arith.constant 0 : index
      %36 = vector.load %arg4[%c0_19, %c0_20] : memref<8x128xf32, #tpu.memory_space<vmem>>, vector<8x128xf32>
      %37 = arith.addf %35, %36 : vector<8x128xf32>
      %c0_21 = arith.constant 0 : index
      %c0_22 = arith.constant 0 : index
      %38 = vector.load %arg6[%c0_21, %c0_22] : memref<8x128xf32, #tpu.memory_space<vmem>>, vector<8x128xf32>
      tpu.vector_store %arg6[%c0_21, %c0_22], %37 {strides = array<i32>} : memref<8x128xf32, #tpu.memory_space<vmem>>, vector<8x128xf32>,
    } else {
    }
    return
  }
  func.func @transform_0(%arg0: i32, %arg1: i32) -> (i32, i32) {
    %c0_i32 = arith.constant 0 : i32
    %c0_i32_0 = arith.constant 0 : i32
    return %c0_i32, %arg1 : i32, i32
  }
  func.func @transform_1(%arg0: i32, %arg1: i32) -> (i32, i32) {
    %c0_i32 = arith.constant 0 : i32
    return %arg0, %arg1 : i32, i32
  }
  func.func @transform_2(%arg0: i32, %arg1: i32) -> (i32, i32) {
    %c0_i32 = arith.constant 0 : i32
    %c0_i32_0 = arith.constant 0 : i32
    return %c0_i32, %arg0 : i32, i32
  }
  func.func @transform_3(%arg0: i32, %arg1: i32) -> (i32, i32) {
    %c0_i32 = arith.constant 0 : i32
    %c0_i32_0 = arith.constant 0 : i32
    return %c0_i32, %arg0 : i32, i32
  }
  func.func @transform_4(%arg0: i32, %arg1: i32) -> (i32, i32) {
    %c0_i32 = arith.constant 0 : i32
    %c0_i32_0 = arith.constant 0 : i32
    return %c0_i32, %arg0 : i32, i32
  }
}

</mosaic_0001>

<llo_original>
// kernel: tpu_custom_call.1
$region0: #{tpu_custom_call.1}
  #allocation0 [shape = 'u32[]', space=smem, size = 0x4, offset = 0x4, fixed_abs, tag = 'smem constant byte address 0x4 - core index']
  #allocation1 [shape = 'u32[144,128]{1,0:T(1,128)}', space=vmem, size = 0x12000, scoped, tag = 'internal scratch']
  %s0 = inlined_call_operand.hbm [shape: bf16[8,256], index: 0, kind: input, shape index: {}]
  %s1 = inlined_call_operand.hbm [shape: bf16[256,256], index: 1, kind: input, shape index: {}]
  %s2 = inlined_call_operand.hbm [shape: f32[8,256], index: 2, kind: input, shape index: {}]
  %s3 = inlined_call_operand.vmem [shape: f32[2,256], index: 3, kind: input, shape index: {}]
  %s4 = inlined_call_operand.hbm [shape: f32[8,256], index: 4, kind: output, shape index: {}]
  %s5 = sld [smem:[#allocation0]]
  $region73: #{tpu_custom_call.1} parent=0
    _
  %s7 = ssub.s32 1, %s5
  %s8 = scalar_select 0, %s7, %s5
  $region1: #{tpu_custom_call.1} parent=0
    #allocation2 [shape = 'u8[4096]{0}', space=vmem, size = 0x1000, scoped, tag = 'input window, operand 0, single buffered']
    #allocation3 [shape = 's32[2]{0}', space=sflag, size = 0x8, scoped, tag = 'scoped memory for tpu_custom_call.1']
    #allocation4 [shape = 's32[2]{0}', space=sflag, size = 0x8, scoped, tag = 'scoped memory for tpu_custom_call.1']
    #allocation5 [shape = 'u8[131072]{0}', space=vmem, size = 0x20000, scoped, tag = 'input window, operand 1']
    #allocation6 [shape = 's32[2]{0}', space=sflag, size = 0x8, scoped, tag = 'scoped memory for tpu_custom_call.1']
    #allocation7 [shape = 'u8[8192]{0}', space=vmem, size = 0x2000, scoped, tag = 'input window, operand 2']
    #allocation8 [shape = 'u8[8192]{0}', space=vmem, size = 0x2000, scoped, tag = 'output window, operand 0']
    %9 = vsyncpa [#allocation3], 0
    %10 = vsyncpa [#allocation6], 0
    %s11 = scalar_lea.sflag [#allocation6], 1
    %12 = vsyncpa %s11, 0
    %13 = vsyncpa [#allocation4], 0
    %s14 = scalar_lea.sflag [#allocation4], 1
    %15 = vsyncpa %s14, 0
    loop: start=0, step=1, limit=4
    $region2: #{tpu_custom_call.1} parent=1 // loop_pre_header
      _
    $region3: #{tpu_custom_call.1} parent=1 // loop_header
      %s17 = sphi 0, %s21
      %p18 = scmp.ge.s32.totalorder %s17, 4
      %s24 = sphi 0, %s36
      %s25 = sphi 0, %s32
      %s26 = sphi 0, %s24
      %s27 = sphi 0, %s25
      %s28 = sphi 0, %s26
      %s29 = sphi 0, %s27
      %s39 = sphi 0, %s41
      %s42 = sphi 0, %s39
      %s43 = sphi 0, %s42
      %s59 = sphi 0, %s43
      %s67 = sphi 0, %s69
      %s70 = sphi 0, %s67
      %s71 = sphi 0, %s70
      %s87 = sphi 0, %s71
      %s93 = sphi 0, %s95
      %s96 = sphi 0, %s93
      %s97 = sphi 0, %s96
      %s113 = sphi 0, %s97
      %s119 = sphi 0, %s121
      %s122 = sphi 0, %s119
      %s123 = sphi 0, %s122
      %s139 = sphi 0, %s123
      %s145 = sphi 0, %s147
      %s148 = sphi 0, %s145
      %s149 = sphi 0, %s148
      %s165 = sphi 0, %s149
    $region4: #{tpu_custom_call.1} parent=1 // loop_header_branch
      %20 = sbr.rel (%p18) target = $region8
    $region5: #{tpu_custom_call.1} parent=1 // loop_body
      %s22 = ssub.s32 %s17, 1
      %s23 = ssub.s32 %s17, 2
      %s30 = sadd.s32 1, %s25
      %p31 = scmp.ge.s32.totalorder %s30, 1
      %s32 = scalar_select %p31, 0, %s30
      %s33 = sadd.s32 1, %s24
      %s34 = scalar_select %p31, %s33, %s24
      %p35 = scmp.ge.s32.totalorder %s34, 2
      %s36 = scalar_select %p35, 0, %s34
      %s37 = ssub.s32 %s25, %s32
      %p38 = scmp.eq.s32.totalorder %s37, 0
      %s40 = sadd.s32 %s39, 1
      %s41 = scalar_select %p38, %s39, %s40
      %p44 = pneg %p38
      %p45 = scmp.eq.s32.totalorder %s17, 1
      %p46 = por %p44, %p45
      %p47 = scmp.ne.s32.totalorder %s39, %s42
      %p48 = scmp.eq.s32.totalorder %s17, 0
      %p49 = por %p47, %p48
      %p50 = scmp.ne.s32.totalorder %s39, %s42
      %p51 = scmp.eq.s32.totalorder %s22, 1
      %p52 = por %p50, %p51
      %p53 = scmp.ne.s32.totalorder %s42, %s43
      %p54 = scmp.eq.s32.totalorder %s22, 0
      %p55 = por %p53, %p54
      %p56 = scmp.ne.s32.totalorder %s42, %s43
      %p57 = scmp.eq.s32.totalorder %s23, 1
      %p58 = por %p56, %p57
      %p60 = scmp.ne.s32.totalorder %s43, %s59
      %p61 = scmp.eq.s32.totalorder %s23, 0
      %p62 = por %p60, %p61
      %s63 = ssub.s32 %s24, %s36
      %s64 = ssub.s32 %s25, %s32
      %s65 = sor.u32 %s63, %s64
      %p66 = scmp.eq.s32.totalorder %s65, 0
      %s68 = sadd.s32 %s67, 1
      %s69 = scalar_select %p66, %s67, %s68
      %p72 = pneg %p66
      %p73 = scmp.eq.s32.totalorder %s17, 1
      %p74 = por %p72, %p73
      %p75 = scmp.ne.s32.totalorder %s67, %s70
      %p76 = scmp.eq.s32.totalorder %s17, 0
      %p77 = por %p75, %p76
      %p78 = scmp.ne.s32.totalorder %s67, %s70
      %p79 = scmp.eq.s32.totalorder %s22, 1
      %p80 = por %p78, %p79
      %p81 = scmp.ne.s32.totalorder %s70, %s71
      %p82 = scmp.eq.s32.totalorder %s22, 0
      %p83 = por %p81, %p82
      %p84 = scmp.ne.s32.totalorder %s70, %s71
      %p85 = scmp.eq.s32.totalorder %s23, 1
      %p86 = por %p84, %p85
      %p88 = scmp.ne.s32.totalorder %s71, %s87
      %p89 = scmp.eq.s32.totalorder %s23, 0
      %p90 = por %p88, %p89
      %s91 = ssub.s32 %s24, %s36
      %p92 = scmp.eq.s32.totalorder %s91, 0
      %s94 = sadd.s32 %s93, 1
      %s95 = scalar_select %p92, %s93, %s94
      %p98 = pneg %p92
      %p99 = scmp.eq.s32.totalorder %s17, 1
      %p100 = por %p98, %p99
      %p101 = scmp.ne.s32.totalorder %s93, %s96
      %p102 = scmp.eq.s32.totalorder %s17, 0
      %p103 = por %p101, %p102
      %p104 = scmp.ne.s32.totalorder %s93, %s96
      %p105 = scmp.eq.s32.totalorder %s22, 1
      %p106 = por %p104, %p105
      %p107 = scmp.ne.s32.totalorder %s96, %s97
      %p108 = scmp.eq.s32.totalorder %s22, 0
      %p109 = por %p107, %p108
      %p110 = scmp.ne.s32.totalorder %s96, %s97
      %p111 = scmp.eq.s32.totalorder %s23, 1
      %p112 = por %p110, %p111
      %p114 = scmp.ne.s32.totalorder %s97, %s113
      %p115 = scmp.eq.s32.totalorder %s23, 0
      %p116 = por %p114, %p115
      %s117 = ssub.s32 %s24, %s36
      %p118 = scmp.eq.s32.totalorder %s117, 0
      %s120 = sadd.s32 %s119, 1
      %s121 = scalar_select %p118, %s119, %s120
      %p124 = pneg %p118
      %p125 = scmp.eq.s32.totalorder %s17, 1
      %p126 = por %p124, %p125
      %p127 = scmp.ne.s32.totalorder %s119, %s122
      %p128 = scmp.eq.s32.totalorder %s17, 0
      %p129 = por %p127, %p128
      %p130 = scmp.ne.s32.totalorder %s119, %s122
      %p131 = scmp.eq.s32.totalorder %s22, 1
      %p132 = por %p130, %p131
      %p133 = scmp.ne.s32.totalorder %s122, %s123
      %p134 = scmp.eq.s32.totalorder %s22, 0
      %p135 = por %p133, %p134
      %p136 = scmp.ne.s32.totalorder %s122, %s123
      %p137 = scmp.eq.s32.totalorder %s23, 1
      %p138 = por %p136, %p137
      %p140 = scmp.ne.s32.totalorder %s123, %s139
      %p141 = scmp.eq.s32.totalorder %s23, 0
      %p142 = por %p140, %p141
      %s143 = ssub.s32 %s24, %s36
      %p144 = scmp.eq.s32.totalorder %s143, 0
      %s146 = sadd.s32 %s145, 1
      %s147 = scalar_select %p144, %s145, %s146
      %p150 = pneg %p144
      %p151 = scmp.eq.s32.totalorder %s17, 1
      %p152 = por %p150, %p151
      %p153 = scmp.ne.s32.totalorder %s145, %s148
      %p154 = scmp.eq.s32.totalorder %s17, 0
      %p155 = por %p153, %p154
      %p156 = scmp.ne.s32.totalorder %s145, %s148
      %p157 = scmp.eq.s32.totalorder %s22, 1
      %p158 = por %p156, %p157
      %p159 = scmp.ne.s32.totalorder %s148, %s149
      %p160 = scmp.eq.s32.totalorder %s22, 0
      %p161 = por %p159, %p160
      %p162 = scmp.ne.s32.totalorder %s148, %s149
      %p163 = scmp.eq.s32.totalorder %s23, 1
      %p164 = por %p162, %p163
      %p166 = scmp.ne.s32.totalorder %s149, %s165
      %p167 = scmp.eq.s32.totalorder %s23, 0
      %p168 = por %p166, %p167
      %p169 = scmp.le.s32.totalorder 1, %s17
      %p170 = scmp.lt.s32.totalorder %s17, 3
      %p171 = pnand %p169, %p170
      %p172 = pneg %p171
      // Predicated region
      $region9: #{tpu_custom_call.1} parent=5 // pred_check
        _
      $region10: #{tpu_custom_call.1} parent=5 // pred_check_branch
        %174 = sbr.rel (%p171) target = $region12
      $region11: #{tpu_custom_call.1} parent=5 // pred_region
        %s175 = ssub.s32 %s17, 1
        // Predicated region
        $region13: #{tpu_custom_call.1} parent=11 // pred_check
          %p176 = pneg %p55
        $region14: #{tpu_custom_call.1} parent=11 // pred_check_branch
          %178 = sbr.rel (%p176) target = $region16
        $region15: #{tpu_custom_call.1} parent=11 // pred_region
          %s179 = smul.u32 2, %s27
          %s181 = ssub.s32 128, 128
          %182 = vsyncadd [#allocation3], %s181
          %s183 = smul.addr %s179, 64
          %s184 = scalar_lea.hbm %s0, %s183
          %s186 = sshll.u32 [#allocation2], 4
          %s187 = int_to_ptr.vmem [resolvable:$true] %s186
          %189 = dma.hbm_to_vmem [thread:$0]  %s184, 128, %s187, [#allocation3]
        $region16: #{tpu_custom_call.1} parent=11 // pred_fallthru
          _
      $region12: #{tpu_custom_call.1} parent=5 // pred_fallthru
        _
      %p190 = scmp.lt.s32.totalorder %s17, 2
      // Predicated region
      $region17: #{tpu_custom_call.1} parent=5 // pred_check
        %p191 = pneg %p190
      $region18: #{tpu_custom_call.1} parent=5 // pred_check_branch
        %193 = sbr.rel (%p191) target = $region20
      $region19: #{tpu_custom_call.1} parent=5 // pred_region
        // Predicated region
        $region21: #{tpu_custom_call.1} parent=19 // pred_check
          %p194 = pneg %p77
        $region22: #{tpu_custom_call.1} parent=19 // pred_check_branch
          %196 = sbr.rel (%p194) target = $region24
        $region23: #{tpu_custom_call.1} parent=19 // pred_region
          %s197 = sand.u32 %s17, 1
          %s198 = scalar_lea.sflag [#allocation6], %s197
          %s199 = sand.u32 %s67, 1
          %s200 = smul.addr %s199, 128
          %s201 = scalar_lea.vmem [#allocation5], %s200
          %s202 = smul.u32 16, %s24
          %s203 = smul.u32 2, %s25
          %s205 = ssub.s32 2048, 2048
          %206 = vsyncadd %s198, %s205
          %s207 = smul.addr %s202, 2
          %s208 = sadd.s32 %s203, %s207
          %s209 = smul.addr %s208, 64
          %s210 = scalar_lea.hbm %s1, %s209
          %s211 = sshll.u32 %s201, 4
          %s212 = int_to_ptr.vmem [resolvable:$true] %s211
          %217 = dma.hbm_to_vmem [thread:$0]  %s210, 2048, %s212, %s198, 128, 128, 8
        $region24: #{tpu_custom_call.1} parent=19 // pred_fallthru
          _
        // Predicated region
        $region25: #{tpu_custom_call.1} parent=19 // pred_check
          %p218 = pneg %p103
        $region26: #{tpu_custom_call.1} parent=19 // pred_check_branch
          %220 = sbr.rel (%p218) target = $region28
        $region27: #{tpu_custom_call.1} parent=19 // pred_region
          %s221 = sand.u32 %s17, 1
          %s222 = scalar_lea.sflag [#allocation6], %s221
          %s223 = sand.u32 %s93, 1
          %s224 = smul.addr %s223, 8
          %s225 = scalar_lea.vmem [#allocation7], %s224
          %s227 = ssub.s32 128, 128
          %228 = vsyncadd %s222, %s227
          %s229 = smul.addr %s24, 128
          %s230 = scalar_lea.hbm %s2, %s229
          %s232 = sshll.u32 %s225, 4
          %s233 = int_to_ptr.vmem [resolvable:$true] %s232
          %235 = dma.hbm_to_vmem [thread:$0]  %s230, 128, %s233, %s222
        $region28: #{tpu_custom_call.1} parent=19 // pred_fallthru
          _
        // Predicated region
        $region29: #{tpu_custom_call.1} parent=19 // pred_check
          %p236 = pneg %p129
        $region30: #{tpu_custom_call.1} parent=19 // pred_check_branch
          %238 = sbr.rel (%p236) target = $region32
        $region31: #{tpu_custom_call.1} parent=19 // pred_region
          %p239 = scmp.lt.s32.totalorder %s24, 1
          %s240 = scalar_select %p239, %s24, 1
          %s241 = smul.addr %s240, 2
          %s242 = scalar_lea.vmem %s3, %s241
        $region32: #{tpu_custom_call.1} parent=19 // pred_fallthru
          _
      $region20: #{tpu_custom_call.1} parent=5 // pred_fallthru
        _
      %p243 = scmp.le.s32.totalorder 1, %s17
      %p244 = scmp.lt.s32.totalorder %s17, 3
      %p245 = pnand %p243, %p244
      %p246 = pneg %p245
      // Predicated region
      $region33: #{tpu_custom_call.1} parent=5 // pred_check
        _
      $region34: #{tpu_custom_call.1} parent=5 // pred_check_branch
        %248 = sbr.rel (%p245) target = $region36
      $region35: #{tpu_custom_call.1} parent=5 // pred_region
        %s249 = ssub.s32 %s17, 1
        // Predicated region
        $region37: #{tpu_custom_call.1} parent=35 // pred_check
          %p250 = pneg %p55
        $region38: #{tpu_custom_call.1} parent=35 // pred_check_branch
          %252 = sbr.rel (%p250) target = $region40
        $region39: #{tpu_custom_call.1} parent=35 // pred_region
          %253 = dma.done [#allocation3], 128
        $region40: #{tpu_custom_call.1} parent=35 // pred_fallthru
          _
        %s254 = sand.u32 %s22, 1
        %s255 = scalar_lea.sflag [#allocation6], %s254
        %s256 = sand.u32 %s70, 1
        %s257 = smul.addr %s256, 128
        %s258 = scalar_lea.vmem [#allocation5], %s257
        // Predicated region
        $region41: #{tpu_custom_call.1} parent=35 // pred_check
          %p259 = pneg %p83
        $region42: #{tpu_custom_call.1} parent=35 // pred_check_branch
          %261 = sbr.rel (%p259) target = $region44
        $region43: #{tpu_custom_call.1} parent=35 // pred_region
          %262 = dma.done %s255, 2048
        $region44: #{tpu_custom_call.1} parent=35 // pred_fallthru
          _
        %s263 = sand.u32 %s22, 1
        %s264 = scalar_lea.sflag [#allocation6], %s263
        %s265 = sand.u32 %s96, 1
        %s266 = smul.addr %s265, 8
        %s267 = scalar_lea.vmem [#allocation7], %s266
        // Predicated region
        $region45: #{tpu_custom_call.1} parent=35 // pred_check
          %p268 = pneg %p109
        $region46: #{tpu_custom_call.1} parent=35 // pred_check_branch
          %270 = sbr.rel (%p268) target = $region48
        $region47: #{tpu_custom_call.1} parent=35 // pred_region
          %271 = dma.done %s264, 128
        $region48: #{tpu_custom_call.1} parent=35 // pred_fallthru
          _
        %p272 = pneg %p55
        %p273 = pneg %p52
        %s274 = sand.u32 %s22, 1
        %s275 = scalar_lea.sflag [#allocation6], %s274
        %s276 = sand.u32 %s70, 1
        %s277 = smul.addr %s276, 128
        %s278 = scalar_lea.vmem [#allocation5], %s277
        %p279 = pneg %p83
        %p280 = pneg %p80
        %s281 = sand.u32 %s22, 1
        %s282 = scalar_lea.sflag [#allocation6], %s281
        %s283 = sand.u32 %s96, 1
        %s284 = smul.addr %s283, 8
        %s285 = scalar_lea.vmem [#allocation7], %s284
        %p286 = pneg %p109
        %p287 = pneg %p106
        %p288 = scmp.lt.s32.totalorder %s26, 1
        %s289 = scalar_select %p288, %s26, 1
        %s290 = smul.addr %s289, 2
        %s291 = scalar_lea.vmem %s3, %s290
        %p292 = pneg %p135
        %p293 = pneg %p132
        %p294 = pneg %p161
        %p295 = pneg %p158
        %s296 = sand.u32 %s148, 1
        %s297 = scalar_lea.sflag [#allocation4], %s296
        %s298 = sand.u32 %s148, 1
        %s299 = smul.addr %s298, 8
        %s300 = scalar_lea.vmem [#allocation8], %s299
        %s301 = smul.u32 2, %s27
        %s302 = smul.u32 16, %s26
        %s303 = smul.u32 2, %s27
        %p304 = scmp.lt.s32.totalorder %s26, 1
        %s305 = scalar_select %p304, %s26, 1
        %s306 = smul.addr %s305, 2
        %s307 = scalar_lea.vmem %s3, %s306
        %v309 = vld [vmem:[#allocation2] sm:$0xff]
        %v310 = vld [vmem:[%s258] sm:$0xff]
        %v311 = vld [vmem:[%s258 + $0x8] sm:$0xff]
        %v312 = vld [vmem:[%s258 + $0x10] sm:$0xff]
        %v313 = vld [vmem:[%s258 + $0x18] sm:$0xff]
        %v314 = vld [vmem:[%s258 + $0x20] sm:$0xff]
        %v315 = vld [vmem:[%s258 + $0x28] sm:$0xff]
        %v316 = vld [vmem:[%s258 + $0x30] sm:$0xff]
        %v317 = vld [vmem:[%s258 + $0x38] sm:$0xff]
        %v318 = vld [vmem:[%s258 + $0x40] sm:$0xff]
        %v319 = vld [vmem:[%s258 + $0x48] sm:$0xff]
        %v320 = vld [vmem:[%s258 + $0x50] sm:$0xff]
        %v321 = vld [vmem:[%s258 + $0x58] sm:$0xff]
        %v322 = vld [vmem:[%s258 + $0x60] sm:$0xff]
        %v323 = vld [vmem:[%s258 + $0x68] sm:$0xff]
        %v324 = vld [vmem:[%s258 + $0x70] sm:$0xff]
        %v325 = vld [vmem:[%s258 + $0x78] sm:$0xff]
        %v327 = vunpack.c.l.b16 %v309
        %v328 = vunpack.c.h.b16 %v309
        %v329 = vpack.c.b16 %v327, %v327
        %v330 = vpack.c.b16 %v328, %v328
        %v349 = vunpack.c.l.b16 %v310
        %v350 = vunpack.c.h.b16 %v310
        %v351 = vunpack.c.l.b16 %v311
        %v352 = vunpack.c.h.b16 %v311
        %v353 = vunpack.c.l.b16 %v312
        %v354 = vunpack.c.h.b16 %v312
        %v355 = vunpack.c.l.b16 %v313
        %v356 = vunpack.c.h.b16 %v313
        %v357 = vunpack.c.l.b16 %v314
        %v358 = vunpack.c.h.b16 %v314
        %v359 = vunpack.c.l.b16 %v315
        %v360 = vunpack.c.h.b16 %v315
        %v361 = vunpack.c.l.b16 %v316
        %v362 = vunpack.c.h.b16 %v316
        %v363 = vunpack.c.l.b16 %v317
        %v364 = vunpack.c.h.b16 %v317
        %v365 = vunpack.c.l.b16 %v318
        %v366 = vunpack.c.h.b16 %v318
        %v367 = vunpack.c.l.b16 %v319
        %v368 = vunpack.c.h.b16 %v319
        %v369 = vunpack.c.l.b16 %v320
        %v370 = vunpack.c.h.b16 %v320
        %v371 = vunpack.c.l.b16 %v321
        %v372 = vunpack.c.h.b16 %v321
        %v373 = vunpack.c.l.b16 %v322
        %v374 = vunpack.c.h.b16 %v322
        %v375 = vunpack.c.l.b16 %v323
        %v376 = vunpack.c.h.b16 %v323
        %v377 = vunpack.c.l.b16 %v324
        %v378 = vunpack.c.h.b16 %v324
        %v379 = vunpack.c.l.b16 %v325
        %v380 = vunpack.c.h.b16 %v325
        %v381 = vpack.c.b16 %v351, %v349
        %v382 = vpack.c.b16 %v352, %v350
        %v383 = vpack.c.b16 %v355, %v353
        %v384 = vpack.c.b16 %v356, %v354
        %v385 = vpack.c.b16 %v359, %v357
        %v386 = vpack.c.b16 %v360, %v358
        %v387 = vpack.c.b16 %v363, %v361
        %v388 = vpack.c.b16 %v364, %v362
        %v389 = vpack.c.b16 %v367, %v365
        %v390 = vpack.c.b16 %v368, %v366
        %v391 = vpack.c.b16 %v371, %v369
        %v392 = vpack.c.b16 %v372, %v370
        %v393 = vpack.c.b16 %v375, %v373
        %v394 = vpack.c.b16 %v376, %v374
        %v395 = vpack.c.b16 %v379, %v377
        %v396 = vpack.c.b16 %v380, %v378
        %413 = vmatprep.subr.bf16.mxu0 %v382
        %414 = vmatpush1.bf16.xpose.msra.mxu0 %v381
        %415 = vmatprep.subr.bf16.mxu0 %v384
        %416 = vmatpush1.bf16.xpose.msra.mxu0 %v383
        %417 = vmatprep.subr.bf16.mxu0 %v386
        %418 = vmatpush1.bf16.xpose.msra.mxu0 %v385
        %419 = vmatprep.subr.bf16.mxu0 %v388
        %420 = vmatpush1.bf16.xpose.msra.mxu0 %v387
        %421 = vmatprep.subr.bf16.mxu0 %v390
        %422 = vmatpush1.bf16.xpose.msra.mxu0 %v389
        %423 = vmatprep.subr.bf16.mxu0 %v392
        %424 = vmatpush1.bf16.xpose.msra.mxu0 %v391
        %425 = vmatprep.subr.bf16.mxu0 %v394
        %426 = vmatpush1.bf16.xpose.msra.mxu0 %v393
        %427 = vmatprep.subr.bf16.mxu0 %v396
        %428 = vmatpush1.bf16.xpose.msra.mxu0 %v395
        %429 = vmatprep.subr.bf16.mxu0 0
        %430 = vmatpush1.bf16.xpose.msra.mxu0 0
        %431 = vmatprep.subr.bf16.mxu0 0
        %432 = vmatpush1.bf16.xpose.msra.mxu0 0
        %433 = vmatprep.subr.bf16.mxu0 0
        %434 = vmatpush1.bf16.xpose.msra.mxu0 0
        %435 = vmatprep.subr.bf16.mxu0 0
        %436 = vmatpush1.bf16.xpose.msra.mxu0 0
        %437 = vmatprep.subr.bf16.mxu0 0
        %438 = vmatpush1.bf16.xpose.msra.mxu0 0
        %439 = vmatprep.subr.bf16.mxu0 0
        %440 = vmatpush1.bf16.xpose.msra.mxu0 0
        %441 = vmatprep.subr.bf16.mxu0 0
        %442 = vmatpush1.bf16.xpose.msra.mxu0 0
        %443 = vmatprep.subr.bf16.mxu0 0
        %444 = vmatpush1.bf16.xpose.msra.mxu0 0
        %445 = vmatprep.mubr.bf16.mxu0 %v330
        %446 = vmatmul.mubr.bf16.gmra.mrb[0].mxu0 %v329
        %v447 = vpop.f32.mrb[0].mxu0
        %v448 = vadd.f32 0.0, %v447
        %v449 = vpop.f32.mrb[0].mxu0
        %v450 = vpop.f32.mrb[0].mxu0
        %v451 = vpop.f32.mrb[0].mxu0
        %452 = vdwg.mxu0
        %p453 = scmp.eq.s32.totalorder %s27, 0
        // Predicated region
        $region49: #{tpu_custom_call.1} parent=35 // pred_check
          %p454 = pneg %p453
        $region50: #{tpu_custom_call.1} parent=35 // pred_check_branch
          %456 = sbr.rel (%p454) target = $region52
        $region51: #{tpu_custom_call.1} parent=35 // pred_region
          %457 = vst [vmem:[%s300] sm:$0xff] %v448
        $region52: #{tpu_custom_call.1} parent=35 // pred_fallthru
          _
        %p458 = scmp.ne.s32.totalorder %s27, 0
        // Predicated region
        $region53: #{tpu_custom_call.1} parent=35 // pred_check
          %p459 = pneg %p458
        $region54: #{tpu_custom_call.1} parent=35 // pred_check_branch
          %461 = sbr.rel (%p459) target = $region56
        $region55: #{tpu_custom_call.1} parent=35 // pred_region
          %v462 = vld [vmem:[%s300] sm:$0xff]
          %v463 = vadd.f32 %v462, %v448
          %464 = vst [vmem:[%s300] sm:$0xff] %v463
        $region56: #{tpu_custom_call.1} parent=35 // pred_fallthru
          _
        // Predicated region
        $region57: #{tpu_custom_call.1} parent=35 // pred_check
          %p465 = pneg %p453
        $region58: #{tpu_custom_call.1} parent=35 // pred_check_branch
          %467 = sbr.rel (%p465) target = $region60
        $region59: #{tpu_custom_call.1} parent=35 // pred_region
          %v468 = vld [vmem:[%s300] sm:$0xff]
          %v469 = vrot.slane %v468, 4
          %v470 = vadd.f32 %v468, %v469
          %v471 = vrot.slane %v470, 2
          %v472 = vadd.f32 %v470, %v471
          %v473 = vrot.slane %v472, 1
          %v474 = vadd.f32 %v472, %v473
          %v475 = vrcp.pop 8.0
          %v476 = vmul.f32 %v474, %v475
          %v477 = vsub.f32 %v468, %v476
          %v478 = vmul.f32 %v477, %v477
          %v479 = vrot.slane %v478, 4
          %v480 = vadd.f32 %v478, %v479
          %v481 = vrot.slane %v480, 2
          %v482 = vadd.f32 %v480, %v481
          %v483 = vrot.slane %v482, 1
          %v484 = vadd.f32 %v482, %v483
          %v485 = vmul.f32 %v484, %v475
          %v486 = vld [vmem:[%s307] sm:$0x1]
          %v487 = vadd.f32 %v485, 1e-05
          %v488 = vrsqrt.pop %v487
          %v489 = vmul.f32 %v486, %v488
          %v490 = vlaneseq
          %v491 = vshrl.u32 %v490, 7
          %v492 = vsub.s32 0, %v491
          %v493 = vrot.slane %v489, %v492
          %v494 = vmul.f32 %v477, %v493
          %v495 = vld [vmem:[%s307 + $0x1] sm:$0x1]
          %v496 = vlaneseq
          %v497 = vshrl.u32 %v496, 7
          %v498 = vsub.s32 0, %v497
          %v499 = vrot.slane %v495, %v498
          %v500 = vadd.f32 %v494, %v499
          %v501 = vmax.f32 %v500, 0.0
          %v502 = vld [vmem:[%s267] sm:$0xff]
          %v503 = vadd.f32 %v501, %v502
          %504 = vst [vmem:[%s300] sm:$0xff] %v503
        $region60: #{tpu_custom_call.1} parent=35 // pred_fallthru
          _
        %s505 = sand.u32 %s148, 1
        %s506 = scalar_lea.sflag [#allocation4], %s505
        %s507 = sand.u32 %s148, 1
        %s508 = smul.addr %s507, 8
        %s509 = scalar_lea.vmem [#allocation8], %s508
        // Predicated region
        $region61: #{tpu_custom_call.1} parent=35 // pred_check
          %p510 = pneg %p158
        $region62: #{tpu_custom_call.1} parent=35 // pred_check_branch
          %512 = sbr.rel (%p510) target = $region64
        $region63: #{tpu_custom_call.1} parent=35 // pred_region
          %s514 = ssub.s32 128, 128
          %515 = vsyncadd %s506, %s514
          %s516 = smul.addr %s26, 128
          %s517 = scalar_lea.hbm %s4, %s516
          %s519 = sshll.u32 %s509, 4
          %s520 = int_to_ptr.vmem [resolvable:$true] %s519
          %522 = dma.vmem_to_hbm [thread:$0]  %s520, 128, %s517, %s506
        $region64: #{tpu_custom_call.1} parent=35 // pred_fallthru
          _
      $region36: #{tpu_custom_call.1} parent=5 // pred_fallthru
        _
      %p523 = scmp.le.s32.totalorder 2, %s17
      // Predicated region
      $region65: #{tpu_custom_call.1} parent=5 // pred_check
        %p524 = pneg %p523
      $region66: #{tpu_custom_call.1} parent=5 // pred_check_branch
        %526 = sbr.rel (%p524) target = $region68
      $region67: #{tpu_custom_call.1} parent=5 // pred_region
        %s527 = ssub.s32 %s17, 2
        // Predicated region
        $region69: #{tpu_custom_call.1} parent=67 // pred_check
          %p528 = pneg %p164
        $region70: #{tpu_custom_call.1} parent=67 // pred_check_branch
          %530 = sbr.rel (%p528) target = $region72
        $region71: #{tpu_custom_call.1} parent=67 // pred_region
          %s531 = sand.u32 %s149, 1
          %s532 = scalar_lea.sflag [#allocation4], %s531
          %s533 = sand.u32 %s149, 1
          %s534 = smul.addr %s533, 8
          %s535 = scalar_lea.vmem [#allocation8], %s534
          %536 = dma.done %s532, 128
        $region72: #{tpu_custom_call.1} parent=67 // pred_fallthru
          _
      $region68: #{tpu_custom_call.1} parent=5 // pred_fallthru
        _
    $region6: #{tpu_custom_call.1} parent=1 // loop_footer
      %s21 = sadd.s32 1, %s17
    $region7: #{tpu_custom_call.1} parent=1 // loop_footer_branch
      %16 = sbr.rel target = $region3
    $region8: #{tpu_custom_call.1} parent=1 // loop_exit
      _
    %537 = vsyncpa [#allocation3], 1
    %s538 = scalar_lea.sflag [#allocation3], 1
    %539 = vsyncpa %s538, 1
    %540 = vsyncpa [#allocation6], 1
    %s541 = scalar_lea.sflag [#allocation6], 1
    %542 = vsyncpa %s541, 1
    %543 = vsyncpa [#allocation4], 1
    %s544 = scalar_lea.sflag [#allocation4], 1
    %545 = vsyncpa %s544, 1

</llo_original>
